<compile_context>
chip_gen: v5e
topology: v5e:2x2
jax: 0.10.0
libtpu: 0.0.40
codegen_flags: <defaults>
</compile_context>

<pallas_src>
import functools

import jax
import jax.numpy as jnp
from jax.experimental import pallas as pl
from jax.experimental.pallas import tpu as pltpu

_MIB = 1024 * 1024


def _cdiv(a, b):
    return -(-a // b)


def _round_up(x, m):
    return _cdiv(x, m) * m


def _vmem_capacity_bytes():
    """Physical VMEM per core (trace-time query); conservative fallback = v7x."""
    try:
        info = pltpu.get_tpu_info()
        cap = getattr(info, "vmem_capacity_bytes", None)
        if cap is not None and int(cap) > 0:
            return int(cap)
    except Exception:
        pass
    return 64 * _MIB


def _pick_spatial_tile(C, S, itemsize, max_block_bytes):
    """Lane-dense spatial tile with minimal padding.

    Returns (TS, NT) with TS a multiple of 128, TS*NT >= S, TS <= the per-block
    byte budget, and total padding < 128*NT lanes.
    """
    lane_budget = max(128, ((max_block_bytes // max(1, C * itemsize)) // 128) * 128)
    nt = max(1, _cdiv(S, lane_budget))
    ts = 128 * _cdiv(S, 128 * nt)
    return ts, nt


# --------------------------------- in-kernel helpers ---------------------------------
def _sigmoid(v):
    # tanh form -> one EUP transcendental push (instead of exp + divide).
    return 0.5 * (jnp.tanh(0.5 * v) + 1.0)


def _cse_scale(m, w1t_ref, b1_ref, w2_ref, b2_ref):
    """Tiny excitation MLP: (C,1) channel mean -> (C,1) sigmoid scale (f32).

    Written with broadcast-multiplies + sublane/lane reductions only so it lowers
    robustly even for tiny C and C/r (no small matmuls, no transposes).
    """
    w1t = w1t_ref[...]                                                   # (C, Cr) f32
    z1 = jnp.sum(w1t * m, axis=0, keepdims=True) + b1_ref[...]           # (1, Cr)
    z1 = jnp.maximum(z1, 0.0)
    z2 = jnp.sum(w2_ref[...] * z1, axis=-1, keepdims=True) + b2_ref[...]  # (C, 1)
    return _sigmoid(z2)                                                   # (C, 1) f32


def _excite(x, c_scale, wc_ref, bc_ref):
    """sSE 1x1 conv + sigmoid, combined excitation x*(c_scale + s_scale)."""
    wc = wc_ref[...].astype(x.dtype)                                      # (C, 1)
    s = jnp.sum(x * wc, axis=0, keepdims=True)                            # (1, TS)
    s_scale = _sigmoid(s.astype(jnp.float32) + bc_ref[0])                 # (1, TS) f32
    # Cast the scales down once; the broadcast-add and multiply stay in x.dtype
    # (keeps bf16 inputs in bf16 on v6e/v7x; no-op for f32).
    scale = c_scale.astype(x.dtype) + s_scale.astype(x.dtype)             # (C, TS)
    return x * scale


# ------------------------------- single-pass fused kernel ----------------------------
def _scse_fused_kernel(x_ref, w1t_ref, b1_ref, w2_ref, b2_ref, wc_ref, bc_ref,
                       o_ref, *, inv_s):
    x = x_ref[0]                                                          # (C, Sp)
    # GAP in f32 (zero padding does not perturb the sum; divide by the true S).
    m = jnp.sum(x.astype(jnp.float32), axis=-1, keepdims=True) * inv_s    # (C, 1)
    c_scale = _cse_scale(m, w1t_ref, b1_ref, w2_ref, b2_ref)              # (C, 1)
    o_ref[0] = _excite(x, c_scale, wc_ref, bc_ref).astype(o_ref.dtype)


# --------------------------------- two-pass kernels ----------------------------------
def _gap_kernel(x_ref, sum_ref):
    # x_ref: (1, C, TS); sum_ref: (1, C, 1) accumulator resident across the s axis.
    @pl.when(pl.program_id(1) == 0)
    def _():
        sum_ref[...] = jnp.zeros_like(sum_ref)

    sum_ref[0] += jnp.sum(x_ref[0].astype(jnp.float32), axis=-1, keepdims=True)


def _scse_excite_kernel(x_ref, gap_ref, w1t_ref, b1_ref, w2_ref, b2_ref, wc_ref,
                        bc_ref, o_ref, *, inv_s):
    x = x_ref[0]                                                          # (C, TS)
    m = gap_ref[0] * inv_s                                                # (C, 1) f32
    # Recomputed per tile (O(C*Cr) VPU work, negligible) so both grid axes stay
    # fully "parallel" (megacore friendly) with no resident scratch needed.
    c_scale = _cse_scale(m, w1t_ref, b1_ref, w2_ref, b2_ref)
    o_ref[0] = _excite(x, c_scale, wc_ref, bc_ref).astype(o_ref.dtype)


# -------------------------------------- wrapper ---------------------------------------
def scse_pallas(x, w1, b1, w2, b2, wc, bc, *, force_two_pass=False, block_bytes=None):
    """x: (B, C, H, W). Returns (B, C, H, W). Matches the PyTorch scSE forward."""
    B, C, H, W = x.shape
    S = H * W
    Cr = w1.shape[0]
    itemsize = jnp.dtype(x.dtype).itemsize

    # Generation-aware budgets (v7x has only 64 MiB physical VMEM).
    cap = _vmem_capacity_bytes()
    if cap >= 96 * _MIB:                     # v5e / v6e (128 MiB)
        vmem_limit, block_budget = 96 * _MIB, 8 * _MIB
    else:                                    # v7x (64 MiB)
        vmem_limit, block_budget = 44 * _MIB, 4 * _MIB
    if block_bytes is not None:
        block_budget = block_bytes

    # Kernel-friendly parameter layouts (tiny, f32).
    w1t = jnp.asarray(w1, jnp.float32).T.reshape(C, Cr)    # linear1.weight^T
    b1r = jnp.asarray(b1, jnp.float32).reshape(1, Cr)
    w2m = jnp.asarray(w2, jnp.float32).reshape(C, Cr)      # linear2.weight
    b2c = jnp.asarray(b2, jnp.float32).reshape(C, 1)
    wcc = jnp.asarray(wc, jnp.float32).reshape(C, 1)       # conv.weight (1,C,1,1)
    bcs = jnp.asarray(bc, jnp.float32).reshape(1)          # conv.bias -> SMEM scalar

    # Single-pass fast path if the whole per-batch slab (double-buffered in/out
    # pipeline + f32 temporaries) comfortably fits the scoped VMEM limit.
    S128 = _round_up(S, 128)
    slab_in = C * S128 * itemsize
    slab_f32 = C * S128 * 4
    one_pass_footprint = 4 * slab_in + 4 * slab_f32
    single_pass = (not force_two_pass) and one_pass_footprint <= int(0.9 * vmem_limit)

    if single_pass:
        TS, NT = S128, 1
    else:
        TS, NT = _pick_spatial_tile(C, S, itemsize, block_budget)
    Sp = TS * NT

    x_flat = x.reshape(B, C, S)
    if Sp != S:
        # Zero padding does not perturb the GAP sum (we divide by the true S) and
        # padded outputs are sliced off below.  Padding is kept < 128*NT lanes.
        x_flat = jnp.pad(x_flat, ((0, 0), (0, 0), (0, Sp - S)))

    inv_s = 1.0 / float(S)

    if single_pass:
        out = pl.pallas_call(
            functools.partial(_scse_fused_kernel, inv_s=inv_s),
            out_shape=jax.ShapeDtypeStruct((B, C, Sp), x.dtype),
            grid_spec=pltpu.PrefetchScalarGridSpec(
                num_scalar_prefetch=0,
                grid=(B,),
                in_specs=[
                    pl.BlockSpec((1, C, Sp), lambda b: (b, 0, 0)),      # x slab
                    pl.BlockSpec((C, Cr), lambda b: (0, 0)),            # w1^T
                    pl.BlockSpec((1, Cr), lambda b: (0, 0)),            # b1
                    pl.BlockSpec((C, Cr), lambda b: (0, 0)),            # w2
                    pl.BlockSpec((C, 1), lambda b: (0, 0)),             # b2
                    pl.BlockSpec((C, 1), lambda b: (0, 0)),             # conv weight
                    pl.BlockSpec(memory_space=pltpu.MemorySpace.SMEM),  # conv bias
                ],
                out_specs=pl.BlockSpec((1, C, Sp), lambda b: (b, 0, 0)),
            ),
            compiler_params=pltpu.CompilerParams(
                dimension_semantics=("parallel",),
                vmem_limit_bytes=vmem_limit,
            ),
            cost_estimate=pl.CostEstimate(
                flops=6 * B * C * Sp,
                transcendentals=B * (Sp + C),
                bytes_accessed=2 * B * C * Sp * itemsize,
            ),
        )(x_flat, w1t, b1r, w2m, b2c, wcc, bcs)
    else:
        # ---- pass 1: tiled global-average-pool (spatial sum, f32 accumulator) ----
        # TODO(synk): on v7x with very small B, split the spatial axis into two
        # "parallel" chunks (partial sums) so both TensorCores get GAP work.
        gap_sum = pl.pallas_call(
            _gap_kernel,
            out_shape=jax.ShapeDtypeStruct((B, C, 1), jnp.float32),
            grid_spec=pltpu.PrefetchScalarGridSpec(
                num_scalar_prefetch=0,
                grid=(B, NT),
                in_specs=[pl.BlockSpec((1, C, TS), lambda b, s: (b, 0, s))],
                out_specs=pl.BlockSpec((1, C, 1), lambda b, s: (b, 0, 0)),
            ),
            compiler_params=pltpu.CompilerParams(
                dimension_semantics=("parallel", "arbitrary"),
                vmem_limit_bytes=vmem_limit,
            ),
            cost_estimate=pl.CostEstimate(
                flops=B * C * Sp,
                transcendentals=0,
                bytes_accessed=B * C * Sp * itemsize,
            ),
        )(x_flat)

        # ---- pass 2: fused cSE MLP + sSE conv + combined excitation ----
        out = pl.pallas_call(
            functools.partial(_scse_excite_kernel, inv_s=inv_s),
            out_shape=jax.ShapeDtypeStruct((B, C, Sp), x.dtype),
            grid_spec=pltpu.PrefetchScalarGridSpec(
                num_scalar_prefetch=0,
                grid=(B, NT),
                in_specs=[
                    pl.BlockSpec((1, C, TS), lambda b, s: (b, 0, s)),   # x tile
                    pl.BlockSpec((1, C, 1), lambda b, s: (b, 0, 0)),    # gap sum
                    pl.BlockSpec((C, Cr), lambda b, s: (0, 0)),         # w1^T
                    pl.BlockSpec((1, Cr), lambda b, s: (0, 0)),         # b1
                    pl.BlockSpec((C, Cr), lambda b, s: (0, 0)),         # w2
                    pl.BlockSpec((C, 1), lambda b, s: (0, 0)),          # b2
                    pl.BlockSpec((C, 1), lambda b, s: (0, 0)),          # conv weight
                    pl.BlockSpec(memory_space=pltpu.MemorySpace.SMEM),  # conv bias
                ],
                out_specs=pl.BlockSpec((1, C, TS), lambda b, s: (b, 0, s)),
            ),
            compiler_params=pltpu.CompilerParams(
                dimension_semantics=("parallel", "parallel"),
                vmem_limit_bytes=vmem_limit,
            ),
            cost_estimate=pl.CostEstimate(
                flops=5 * B * C * Sp,
                transcendentals=B * (Sp + C),
                bytes_accessed=2 * B * C * Sp * itemsize,
            ),
        )(x_flat, gap_sum, w1t, b1r, w2m, b2c, wcc, bcs)

    if Sp != S:
        out = out[:, :, :S]
    return out.reshape(B, C, H, W)


def scse_reference(x, w1, b1, w2, b2, wc, bc):
    """Pure-JAX reference matching the PyTorch forward."""
    B, C, H, W = x.shape
    # cSE
    m = x.reshape(B, C, H * W).mean(-1)                    # (B, C)
    z1 = jax.nn.relu(m @ w1.T + b1)                        # (B, Cr)
    z2 = z1 @ w2.T + b2                                    # (B, C)
    c_scale = jax.nn.sigmoid(z2)[:, :, None, None]         # (B, C, 1, 1)
    cse = x * c_scale
    # sSE
    s = jnp.einsum("bchw,c->bhw", x, wc) + bc[0]           # (B, H, W)
    s_scale = jax.nn.sigmoid(s)[:, None, :, :]             # (B, 1, H, W)
    sse = x * s_scale
    return cse + sse


if __name__ == "__main__":
    # Shapes consistent with the module: in_channels=32, r=16 -> hidden=2.
    B, C, H, W = 2, 32, 16, 16
    r = 16
    Cr = C // r

    key = jax.random.PRNGKey(0)
    kx, k1, k2, k3, k4, k5, k6, kx2 = jax.random.split(key, 8)

    # Deterministic synthetic parameters (nn.Linear / nn.Conv2d shapes).
    w1 = jax.random.normal(k1, (Cr, C), dtype=jnp.float32) * 0.1   # linear1.weight
    b1 = jax.random.normal(k2, (Cr,), dtype=jnp.float32) * 0.1     # linear1.bias
    w2 = jax.random.normal(k3, (C, Cr), dtype=jnp.float32) * 0.1   # linear2.weight
    b2 = jax.random.normal(k4, (C,), dtype=jnp.float32) * 0.1      # linear2.bias
    wc = jax.random.normal(k5, (C,), dtype=jnp.float32) * 0.1      # conv.weight (1,C,1,1)
    bc = jax.random.normal(k6, (1,), dtype=jnp.float32) * 0.1      # conv.bias

    # 1) Single-pass fused path (per-batch slab fits VMEM).
    x = jax.random.normal(kx, (B, C, H, W), dtype=jnp.float32)
    out = jax.block_until_ready(scse_pallas(x, w1, b1, w2, b2, wc, bc))
    ref = scse_reference(x, w1, b1, w2, b2, wc, bc)
    assert out.shape == (B, C, H, W)
    assert jnp.allclose(out, ref, atol=1e-5, rtol=1e-5), float(jnp.max(jnp.abs(out - ref)))

    # 2) Two-pass tiled path (forced), with non-128-aligned spatial to exercise
    #    the minimal-padding + slice logic.
    H2 = W2 = 13
    x2 = jax.random.normal(kx2, (B, C, H2, W2), dtype=jnp.float32)
    out2 = jax.block_until_ready(
        scse_pallas(x2, w1, b1, w2, b2, wc, bc,
                    force_two_pass=True, block_bytes=C * 128 * 4))
    ref2 = scse_reference(x2, w1, b1, w2, b2, wc, bc)
    assert out2.shape == (B, C, H2, W2)
    assert jnp.allclose(out2, ref2, atol=1e-5, rtol=1e-5), float(jnp.max(jnp.abs(out2 - ref2)))

    print("KERNEL_OK")
</pallas_src>

<mosaic_0001>
module attributes {stable_mosaic.version = 11 : i64} {
  func.func @_scse_fused_kernel(%arg0: i32, %arg1: memref<1x32x256xf32, #tpu.memory_space<vmem>>, %arg2: memref<32x2xf32, #tpu.memory_space<vmem>>, %arg3: memref<1x2xf32, #tpu.memory_space<vmem>>, %arg4: memref<32x2xf32, #tpu.memory_space<vmem>>, %arg5: memref<32x1xf32, #tpu.memory_space<vmem>>, %arg6: memref<32x1xf32, #tpu.memory_space<vmem>>, %arg7: memref<1xf32, #tpu.memory_space<smem>>, %arg8: memref<1x32x256xf32, #tpu.memory_space<vmem>>) attributes {dimension_semantics = [#tpu.dimension_semantics<parallel>], iteration_bounds = array<i64: 2>, scalar_prefetch = 0 : i64, scratch_operands = 0 : i64, tpu.core_type = #tpu.core_type<tc>, window_params = [{transform_indices = @transform_0, window_bounds = array<i64: 1, 32, 256>}, {pipeline_mode = #tpu.pipeline_mode<synchronous>, transform_indices = @transform_1, window_bounds = array<i64: 32, 2>}, {pipeline_mode = #tpu.pipeline_mode<synchronous>, transform_indices = @transform_2, window_bounds = array<i64: 1, 2>}, {pipeline_mode = #tpu.pipeline_mode<synchronous>, transform_indices = @transform_3, window_bounds = array<i64: 32, 2>}, {pipeline_mode = #tpu.pipeline_mode<synchronous>, transform_indices = @transform_4, window_bounds = array<i64: 32, 1>}, {pipeline_mode = #tpu.pipeline_mode<synchronous>, transform_indices = @transform_5, window_bounds = array<i64: 32, 1>}, {transform_indices = @transform_6, window_bounds = array<i64: 1>}, {transform_indices = @transform_7, window_bounds = array<i64: 1, 32, 256>}]} {
    %c0 = arith.constant 0 : index
    %c0_0 = arith.constant 0 : index
    %c0_1 = arith.constant 0 : index
    %0 = vector.load %arg1[%c0, %c0_0, %c0_1] : memref<1x32x256xf32, #tpu.memory_space<vmem>>, vector<1x32x256xf32>
    %1 = vector.shape_cast %0 : vector<1x32x256xf32> to vector<32x256xf32>
    %cst = arith.constant dense<0.000000e+00> : vector<32xf32>
    %2 = vector.multi_reduction <add>, %1, %cst [1] : vector<32x256xf32> to vector<32xf32>
    %3 = vector.shape_cast %2 : vector<32xf32> to vector<32x1xf32>
    %cst_2 = arith.constant 3.906250e-03 : f32
    %4 = vector.broadcast %cst_2 : f32 to vector<32x1xf32>
    %5 = arith.mulf %3, %4 : vector<32x1xf32>
    %c0_3 = arith.constant 0 : index
    %c0_4 = arith.constant 0 : index
    %6 = vector.load %arg2[%c0_3, %c0_4] : memref<32x2xf32, #tpu.memory_space<vmem>>, vector<32x2xf32>
    %7 = vector.broadcast %5 : vector<32x1xf32> to vector<32x2xf32>
    %8 = arith.mulf %6, %7 : vector<32x2xf32>
    %cst_5 = arith.constant dense<0.000000e+00> : vector<2xf32>
    %9 = vector.multi_reduction <add>, %8, %cst_5 [0] : vector<32x2xf32> to vector<2xf32>
    %10 = vector.shape_cast %9 : vector<2xf32> to vector<1x2xf32>
    %c0_6 = arith.constant 0 : index
    %c0_7 = arith.constant 0 : index
    %11 = vector.load %arg3[%c0_6, %c0_7] : memref<1x2xf32, #tpu.memory_space<vmem>>, vector<1x2xf32>
    %12 = arith.addf %10, %11 : vector<1x2xf32>
    %cst_8 = arith.constant 0.000000e+00 : f32
    %13 = vector.broadcast %cst_8 : f32 to vector<1x2xf32>
    %14 = arith.maximumf %12, %13 : vector<1x2xf32>
    %c0_9 = arith.constant 0 : index
    %c0_10 = arith.constant 0 : index
    %15 = vector.load %arg4[%c0_9, %c0_10] : memref<32x2xf32, #tpu.memory_space<vmem>>, vector<32x2xf32>
    %16 = vector.broadcast %14 : vector<1x2xf32> to vector<32x2xf32>
    %17 = arith.mulf %15, %16 : vector<32x2xf32>
    %cst_11 = arith.constant dense<0.000000e+00> : vector<32xf32>
    %18 = vector.multi_reduction <add>, %17, %cst_11 [1] : vector<32x2xf32> to vector<32xf32>
    %19 = vector.shape_cast %18 : vector<32xf32> to vector<32x1xf32>
    %c0_12 = arith.constant 0 : index
    %c0_13 = arith.constant 0 : index
    %20 = vector.load %arg5[%c0_12, %c0_13] : memref<32x1xf32, #tpu.memory_space<vmem>>, vector<32x1xf32>
    %21 = arith.addf %19, %20 : vector<32x1xf32>
    %cst_14 = arith.constant 5.000000e-01 : f32
    %22 = vector.broadcast %cst_14 : f32 to vector<32x1xf32>
    %23 = arith.mulf %22, %21 : vector<32x1xf32>
    %24 = math.tanh %23 : vector<32x1xf32>
    %cst_15 = arith.constant 1.000000e+00 : f32
    %25 = vector.broadcast %cst_15 : f32 to vector<32x1xf32>
    %26 = arith.addf %24, %25 : vector<32x1xf32>
    %cst_16 = arith.constant 5.000000e-01 : f32
    %27 = vector.broadcast %cst_16 : f32 to vector<32x1xf32>
    %28 = arith.mulf %27, %26 : vector<32x1xf32>
    %c0_17 = arith.constant 0 : index
    %c0_18 = arith.constant 0 : index
    %29 = vector.load %arg6[%c0_17, %c0_18] : memref<32x1xf32, #tpu.memory_space<vmem>>, vector<32x1xf32>
    %30 = vector.broadcast %29 : vector<32x1xf32> to vector<32x256xf32>
    %31 = arith.mulf %1, %30 : vector<32x256xf32>
    %cst_19 = arith.constant dense<0.000000e+00> : vector<256xf32>
    %32 = vector.multi_reduction <add>, %31, %cst_19 [0] : vector<32x256xf32> to vector<256xf32>
    %33 = vector.shape_cast %32 : vector<256xf32> to vector<1x256xf32>
    %c0_20 = arith.constant 0 : index
    %34 = memref.load %arg7[%c0_20] : memref<1xf32, #tpu.memory_space<smem>>
    %35 = vector.broadcast %34 : f32 to vector<1x256xf32>
    %36 = arith.addf %33, %35 : vector<1x256xf32>
    %cst_21 = arith.constant 5.000000e-01 : f32
    %37 = vector.broadcast %cst_21 : f32 to vector<1x256xf32>
    %38 = arith.mulf %37, %36 : vector<1x256xf32>
    %39 = math.tanh %38 : vector<1x256xf32>
    %cst_22 = arith.constant 1.000000e+00 : f32
    %40 = vector.broadcast %cst_22 : f32 to vector<1x256xf32>
    %41 = arith.addf %39, %40 : vector<1x256xf32>
    %cst_23 = arith.constant 5.000000e-01 : f32
    %42 = vector.broadcast %cst_23 : f32 to vector<1x256xf32>
    %43 = arith.mulf %42, %41 : vector<1x256xf32>
    %44 = vector.broadcast %28 : vector<32x1xf32> to vector<32x256xf32>
    %45 = vector.broadcast %43 : vector<1x256xf32> to vector<32x256xf32>
    %46 = arith.addf %44, %45 : vector<32x256xf32>
    %47 = arith.mulf %1, %46 : vector<32x256xf32>
    %c0_24 = arith.constant 0 : index
    %c0_25 = arith.constant 0 : index
    %c0_26 = arith.constant 0 : index
    %48 = vector.load %arg8[%c0_24, %c0_25, %c0_26] : memref<1x32x256xf32, #tpu.memory_space<vmem>>, vector<1x32x256xf32>
    %49 = vector.shape_cast %48 : vector<1x32x256xf32> to vector<32x256xf32>
    %50 = vector.shape_cast %47 : vector<32x256xf32> to vector<1x32x256xf32>
    tpu.vector_store %arg8[%c0_24, %c0_25, %c0_26], %50 {strides = array<i32>} : memref<1x32x256xf32, #tpu.memory_space<vmem>>, vector<1x32x256xf32>,
    return
  }
  func.func @transform_0(%arg0: i32) -> (i32, i32, i32) {
    %c0_i32 = arith.constant 0 : i32
    %c0_i32_0 = arith.constant 0 : i32
    %c0_i32_1 = arith.constant 0 : i32
    return %arg0, %c0_i32, %c0_i32_0 : i32, i32, i32
  }
  func.func @transform_1(%arg0: i32) -> (i32, i32) {
    %c0_i32 = arith.constant 0 : i32
    %c0_i32_0 = arith.constant 0 : i32
    %c0_i32_1 = arith.constant 0 : i32
    return %c0_i32, %c0_i32_0 : i32, i32
  }
  func.func @transform_2(%arg0: i32) -> (i32, i32) {
    %c0_i32 = arith.constant 0 : i32
    %c0_i32_0 = arith.constant 0 : i32
    %c0_i32_1 = arith.constant 0 : i32
    return %c0_i32, %c0_i32_0 : i32, i32
  }
  func.func @transform_3(%arg0: i32) -> (i32, i32) {
    %c0_i32 = arith.constant 0 : i32
    %c0_i32_0 = arith.constant 0 : i32
    %c0_i32_1 = arith.constant 0 : i32
    return %c0_i32, %c0_i32_0 : i32, i32
  }
  func.func @transform_4(%arg0: i32) -> (i32, i32) {
    %c0_i32 = arith.constant 0 : i32
    %c0_i32_0 = arith.constant 0 : i32
    %c0_i32_1 = arith.constant 0 : i32
    return %c0_i32, %c0_i32_0 : i32, i32
  }
  func.func @transform_5(%arg0: i32) -> (i32, i32) {
    %c0_i32 = arith.constant 0 : i32
    %c0_i32_0 = arith.constant 0 : i32
    %c0_i32_1 = arith.constant 0 : i32
    return %c0_i32, %c0_i32_0 : i32, i32
  }
  func.func @transform_6(%arg0: i32) -> i32 {
    %c0_i32 = arith.constant 0 : i32
    %c0_i32_0 = arith.constant 0 : i32
    return %c0_i32 : i32
  }
  func.func @transform_7(%arg0: i32) -> (i32, i32, i32) {
    %c0_i32 = arith.constant 0 : i32
    %c0_i32_0 = arith.constant 0 : i32
    %c0_i32_1 = arith.constant 0 : i32
    return %arg0, %c0_i32, %c0_i32_0 : i32, i32, i32
  }
}

</mosaic_0001>

<llo_original>
// kernel: tpu_custom_call.1
$region0: #{tpu_custom_call.1}
  #allocation0 [shape = 'u32[]', space=smem, size = 0x4, offset = 0x4, fixed_abs, tag = 'smem constant byte address 0x4 - core index']
  #allocation1 [shape = 'u32[72,128]{1,0:T(1,128)}', space=vmem, size = 0x9000, scoped, tag = 'internal scratch']
  #allocation2 [shape = 'f32[1]{0:T(128)S(6)}', space=smem, size = 0x200, scoped, tag = 'scoped memory for tpu_custom_call.1']
  %s0 = inlined_call_operand.vmem [shape: f32[2,32,256], index: 0, kind: input, shape index: {}]
  %s1 = inlined_call_operand.vmem [shape: f32[32,2], index: 1, kind: input, shape index: {}]
  %s2 = inlined_call_operand.vmem [shape: f32[1,2], index: 2, kind: input, shape index: {}]
  %s3 = inlined_call_operand.vmem [shape: f32[32,2], index: 3, kind: input, shape index: {}]
  %s4 = inlined_call_operand.vmem [shape: f32[32,1], index: 4, kind: input, shape index: {}]
  %s5 = inlined_call_operand.vmem [shape: f32[32,1], index: 5, kind: input, shape index: {}]
  %s6 = inlined_call_operand.<no memory space> [shape: f32[1], index: 6, kind: input, shape index: {}]
  %s7 = inlined_call_operand.hbm [shape: f32[2,32,256], index: 7, kind: output, shape index: {}]
  %s8 = sld [smem:[#allocation0]]
  $region61: #{tpu_custom_call.1} parent=0
    _
  %s10 = ssub.s32 1, %s8
  %s11 = scalar_select 0, %s10, %s8
  %12 = sst [smem:[#allocation2]] %s6
  $region1: #{tpu_custom_call.1} parent=0
    #allocation3 [shape = 'u8[65536]{0}', space=vmem, size = 0x10000, scoped, tag = 'output window, operand 0']
    #allocation4 [shape = 's32[2]{0}', space=sflag, size = 0x8, scoped, tag = 'scoped memory for tpu_custom_call.1']
    %13 = vsyncpa [#allocation4], 0
    %s14 = scalar_lea.sflag [#allocation4], 1
    %15 = vsyncpa %s14, 0
    loop: start=0, step=1, limit=4
    $region2: #{tpu_custom_call.1} parent=1 // loop_pre_header
      _
    $region3: #{tpu_custom_call.1} parent=1 // loop_header
      %s17 = sphi 0, %s21
      %p18 = scmp.ge.s32.totalorder %s17, 4
      %s27 = sphi 0, %s29
      %s30 = sphi 0, %s27
      %s31 = sphi 0, %s30
      %s47 = sphi 0, %s31
      %s51 = sphi 0, %s51
      %s53 = sphi 0, %s51
      %s54 = sphi 0, %s53
      %s68 = sphi 0, %s54
      %s72 = sphi 0, %s72
      %s74 = sphi 0, %s72
      %s75 = sphi 0, %s74
      %s89 = sphi 0, %s75
      %s93 = sphi 0, %s93
      %s95 = sphi 0, %s93
      %s96 = sphi 0, %s95
      %s110 = sphi 0, %s96
      %s114 = sphi 0, %s114
      %s116 = sphi 0, %s114
      %s117 = sphi 0, %s116
      %s131 = sphi 0, %s117
      %s135 = sphi 0, %s135
      %s137 = sphi 0, %s135
      %s138 = sphi 0, %s137
      %s152 = sphi 0, %s138
      %s156 = sphi 0, %s156
      %s158 = sphi 0, %s156
      %s159 = sphi 0, %s158
      %s173 = sphi 0, %s159
      %s179 = sphi 0, %s181
      %s182 = sphi 0, %s179
      %s183 = sphi 0, %s182
      %s199 = sphi 0, %s183
    $region4: #{tpu_custom_call.1} parent=1 // loop_header_branch
      %20 = sbr.rel (%p18) target = $region8
    $region5: #{tpu_custom_call.1} parent=1 // loop_body
      %s22 = ssub.s32 %s17, 1
      %s23 = ssub.s32 %s17, 2
      %s24 = sadd.s32 %s17, 1
      %s25 = ssub.s32 %s17, %s24
      %p26 = scmp.eq.s32.totalorder %s25, 0
      %s28 = sadd.s32 %s27, 1
      %s29 = scalar_select %p26, %s27, %s28
      %p32 = pneg %p26
      %p33 = scmp.eq.s32.totalorder %s17, 1
      %p34 = por %p32, %p33
      %p35 = scmp.ne.s32.totalorder %s27, %s30
      %p36 = scmp.eq.s32.totalorder %s17, 0
      %p37 = por %p35, %p36
      %p38 = scmp.ne.s32.totalorder %s27, %s30
      %p39 = scmp.eq.s32.totalorder %s22, 1
      %p40 = por %p38, %p39
      %p41 = scmp.ne.s32.totalorder %s30, %s31
      %p42 = scmp.eq.s32.totalorder %s22, 0
      %p43 = por %p41, %p42
      %p44 = scmp.ne.s32.totalorder %s30, %s31
      %p45 = scmp.eq.s32.totalorder %s23, 1
      %p46 = por %p44, %p45
      %p48 = scmp.ne.s32.totalorder %s31, %s47
      %p49 = scmp.eq.s32.totalorder %s23, 0
      %p50 = por %p48, %p49
      %s52 = sadd.s32 %s51, 1
      %p55 = scmp.eq.s32.totalorder %s17, 1
      %p56 = scmp.ne.s32.totalorder %s51, %s53
      %p57 = scmp.eq.s32.totalorder %s17, 0
      %p58 = por %p56, %p57
      %p59 = scmp.ne.s32.totalorder %s51, %s53
      %p60 = scmp.eq.s32.totalorder %s22, 1
      %p61 = por %p59, %p60
      %p62 = scmp.ne.s32.totalorder %s53, %s54
      %p63 = scmp.eq.s32.totalorder %s22, 0
      %p64 = por %p62, %p63
      %p65 = scmp.ne.s32.totalorder %s53, %s54
      %p66 = scmp.eq.s32.totalorder %s23, 1
      %p67 = por %p65, %p66
      %p69 = scmp.ne.s32.totalorder %s54, %s68
      %p70 = scmp.eq.s32.totalorder %s23, 0
      %p71 = por %p69, %p70
      %s73 = sadd.s32 %s72, 1
      %p76 = scmp.eq.s32.totalorder %s17, 1
      %p77 = scmp.ne.s32.totalorder %s72, %s74
      %p78 = scmp.eq.s32.totalorder %s17, 0
      %p79 = por %p77, %p78
      %p80 = scmp.ne.s32.totalorder %s72, %s74
      %p81 = scmp.eq.s32.totalorder %s22, 1
      %p82 = por %p80, %p81
      %p83 = scmp.ne.s32.totalorder %s74, %s75
      %p84 = scmp.eq.s32.totalorder %s22, 0
      %p85 = por %p83, %p84
      %p86 = scmp.ne.s32.totalorder %s74, %s75
      %p87 = scmp.eq.s32.totalorder %s23, 1
      %p88 = por %p86, %p87
      %p90 = scmp.ne.s32.totalorder %s75, %s89
      %p91 = scmp.eq.s32.totalorder %s23, 0
      %p92 = por %p90, %p91
      %s94 = sadd.s32 %s93, 1
      %p97 = scmp.eq.s32.totalorder %s17, 1
      %p98 = scmp.ne.s32.totalorder %s93, %s95
      %p99 = scmp.eq.s32.totalorder %s17, 0
      %p100 = por %p98, %p99
      %p101 = scmp.ne.s32.totalorder %s93, %s95
      %p102 = scmp.eq.s32.totalorder %s22, 1
      %p103 = por %p101, %p102
      %p104 = scmp.ne.s32.totalorder %s95, %s96
      %p105 = scmp.eq.s32.totalorder %s22, 0
      %p106 = por %p104, %p105
      %p107 = scmp.ne.s32.totalorder %s95, %s96
      %p108 = scmp.eq.s32.totalorder %s23, 1
      %p109 = por %p107, %p108
      %p111 = scmp.ne.s32.totalorder %s96, %s110
      %p112 = scmp.eq.s32.totalorder %s23, 0
      %p113 = por %p111, %p112
      %s115 = sadd.s32 %s114, 1
      %p118 = scmp.eq.s32.totalorder %s17, 1
      %p119 = scmp.ne.s32.totalorder %s114, %s116
      %p120 = scmp.eq.s32.totalorder %s17, 0
      %p121 = por %p119, %p120
      %p122 = scmp.ne.s32.totalorder %s114, %s116
      %p123 = scmp.eq.s32.totalorder %s22, 1
      %p124 = por %p122, %p123
      %p125 = scmp.ne.s32.totalorder %s116, %s117
      %p126 = scmp.eq.s32.totalorder %s22, 0
      %p127 = por %p125, %p126
      %p128 = scmp.ne.s32.totalorder %s116, %s117
      %p129 = scmp.eq.s32.totalorder %s23, 1
      %p130 = por %p128, %p129
      %p132 = scmp.ne.s32.totalorder %s117, %s131
      %p133 = scmp.eq.s32.totalorder %s23, 0
      %p134 = por %p132, %p133
      %s136 = sadd.s32 %s135, 1
      %p139 = scmp.eq.s32.totalorder %s17, 1
      %p140 = scmp.ne.s32.totalorder %s135, %s137
      %p141 = scmp.eq.s32.totalorder %s17, 0
      %p142 = por %p140, %p141
      %p143 = scmp.ne.s32.totalorder %s135, %s137
      %p144 = scmp.eq.s32.totalorder %s22, 1
      %p145 = por %p143, %p144
      %p146 = scmp.ne.s32.totalorder %s137, %s138
      %p147 = scmp.eq.s32.totalorder %s22, 0
      %p148 = por %p146, %p147
      %p149 = scmp.ne.s32.totalorder %s137, %s138
      %p150 = scmp.eq.s32.totalorder %s23, 1
      %p151 = por %p149, %p150
      %p153 = scmp.ne.s32.totalorder %s138, %s152
      %p154 = scmp.eq.s32.totalorder %s23, 0
      %p155 = por %p153, %p154
      %s157 = sadd.s32 %s156, 1
      %p160 = scmp.eq.s32.totalorder %s17, 1
      %p161 = scmp.ne.s32.totalorder %s156, %s158
      %p162 = scmp.eq.s32.totalorder %s17, 0
      %p163 = por %p161, %p162
      %p164 = scmp.ne.s32.totalorder %s156, %s158
      %p165 = scmp.eq.s32.totalorder %s22, 1
      %p166 = por %p164, %p165
      %p167 = scmp.ne.s32.totalorder %s158, %s159
      %p168 = scmp.eq.s32.totalorder %s22, 0
      %p169 = por %p167, %p168
      %p170 = scmp.ne.s32.totalorder %s158, %s159
      %p171 = scmp.eq.s32.totalorder %s23, 1
      %p172 = por %p170, %p171
      %p174 = scmp.ne.s32.totalorder %s159, %s173
      %p175 = scmp.eq.s32.totalorder %s23, 0
      %p176 = por %p174, %p175
      %s177 = ssub.s32 %s17, %s24
      %p178 = scmp.eq.s32.totalorder %s177, 0
      %s180 = sadd.s32 %s179, 1
      %s181 = scalar_select %p178, %s179, %s180
      %p184 = pneg %p178
      %p185 = scmp.eq.s32.totalorder %s17, 1
      %p186 = por %p184, %p185
      %p187 = scmp.ne.s32.totalorder %s179, %s182
      %p188 = scmp.eq.s32.totalorder %s17, 0
      %p189 = por %p187, %p188
      %p190 = scmp.ne.s32.totalorder %s179, %s182
      %p191 = scmp.eq.s32.totalorder %s22, 1
      %p192 = por %p190, %p191
      %p193 = scmp.ne.s32.totalorder %s182, %s183
      %p194 = scmp.eq.s32.totalorder %s22, 0
      %p195 = por %p193, %p194
      %p196 = scmp.ne.s32.totalorder %s182, %s183
      %p197 = scmp.eq.s32.totalorder %s23, 1
      %p198 = por %p196, %p197
      %p200 = scmp.ne.s32.totalorder %s183, %s199
      %p201 = scmp.eq.s32.totalorder %s23, 0
      %p202 = por %p200, %p201
      %p203 = scmp.le.s32.totalorder 1, %s17
      %p204 = scmp.lt.s32.totalorder %s17, 3
      %p205 = pnand %p203, %p204
      %p206 = pneg %p205
      // Predicated region
      $region9: #{tpu_custom_call.1} parent=5 // pred_check
        _
      $region10: #{tpu_custom_call.1} parent=5 // pred_check_branch
        %208 = sbr.rel (%p205) target = $region12
      $region11: #{tpu_custom_call.1} parent=5 // pred_region
        %s209 = ssub.s32 %s17, 1
        // Predicated region
        $region13: #{tpu_custom_call.1} parent=11 // pred_check
          %p210 = pneg %p64
        $region14: #{tpu_custom_call.1} parent=11 // pred_check_branch
          %212 = sbr.rel (%p210) target = $region16
        $region15: #{tpu_custom_call.1} parent=11 // pred_region
          _
        $region16: #{tpu_custom_call.1} parent=11 // pred_fallthru
          _
        // Predicated region
        $region17: #{tpu_custom_call.1} parent=11 // pred_check
          %p213 = pneg %p85
        $region18: #{tpu_custom_call.1} parent=11 // pred_check_branch
          %215 = sbr.rel (%p213) target = $region20
        $region19: #{tpu_custom_call.1} parent=11 // pred_region
          _
        $region20: #{tpu_custom_call.1} parent=11 // pred_fallthru
          _
        // Predicated region
        $region21: #{tpu_custom_call.1} parent=11 // pred_check
          %p216 = pneg %p106
        $region22: #{tpu_custom_call.1} parent=11 // pred_check_branch
          %218 = sbr.rel (%p216) target = $region24
        $region23: #{tpu_custom_call.1} parent=11 // pred_region
          _
        $region24: #{tpu_custom_call.1} parent=11 // pred_fallthru
          _
        // Predicated region
        $region25: #{tpu_custom_call.1} parent=11 // pred_check
          %p219 = pneg %p127
        $region26: #{tpu_custom_call.1} parent=11 // pred_check_branch
          %221 = sbr.rel (%p219) target = $region28
        $region27: #{tpu_custom_call.1} parent=11 // pred_region
          _
        $region28: #{tpu_custom_call.1} parent=11 // pred_fallthru
          _
        // Predicated region
        $region29: #{tpu_custom_call.1} parent=11 // pred_check
          %p222 = pneg %p148
        $region30: #{tpu_custom_call.1} parent=11 // pred_check_branch
          %224 = sbr.rel (%p222) target = $region32
        $region31: #{tpu_custom_call.1} parent=11 // pred_region
          _
        $region32: #{tpu_custom_call.1} parent=11 // pred_fallthru
          _
        // Predicated region
        $region33: #{tpu_custom_call.1} parent=11 // pred_check
          %p225 = pneg %p169
        $region34: #{tpu_custom_call.1} parent=11 // pred_check_branch
          %227 = sbr.rel (%p225) target = $region36
        $region35: #{tpu_custom_call.1} parent=11 // pred_region
          _
        $region36: #{tpu_custom_call.1} parent=11 // pred_fallthru
          _
      $region12: #{tpu_custom_call.1} parent=5 // pred_fallthru
        _
      %p228 = scmp.lt.s32.totalorder %s17, 2
      // Predicated region
      $region37: #{tpu_custom_call.1} parent=5 // pred_check
        %p229 = pneg %p228
      $region38: #{tpu_custom_call.1} parent=5 // pred_check_branch
        %231 = sbr.rel (%p229) target = $region40
      $region39: #{tpu_custom_call.1} parent=5 // pred_region
        // Predicated region
        $region41: #{tpu_custom_call.1} parent=39 // pred_check
          %p232 = pneg %p37
        $region42: #{tpu_custom_call.1} parent=39 // pred_check_branch
          %234 = sbr.rel (%p232) target = $region44
        $region43: #{tpu_custom_call.1} parent=39 // pred_region
          %p235 = scmp.lt.s32.totalorder %s17, 1
          %s236 = scalar_select %p235, %s17, 1
          %s237 = smul.addr %s236, 8
          %s238 = smul.addr %s237, 8
          %s239 = scalar_lea.vmem %s0, %s238
        $region44: #{tpu_custom_call.1} parent=39 // pred_fallthru
          _
      $region40: #{tpu_custom_call.1} parent=5 // pred_fallthru
        _
      %p240 = scmp.le.s32.totalorder 1, %s17
      %p241 = scmp.lt.s32.totalorder %s17, 3
      %p242 = pnand %p240, %p241
      %p243 = pneg %p242
      // Predicated region
      $region45: #{tpu_custom_call.1} parent=5 // pred_check
        _
      $region46: #{tpu_custom_call.1} parent=5 // pred_check_branch
        %245 = sbr.rel (%p242) target = $region48
      $region47: #{tpu_custom_call.1} parent=5 // pred_region
        %s246 = ssub.s32 %s17, 1
        %p247 = scmp.lt.s32.totalorder %s22, 1
        %s248 = scalar_select %p247, %s22, 1
        %s249 = smul.addr %s248, 8
        %s250 = smul.addr %s249, 8
        %s251 = scalar_lea.vmem %s0, %s250
        %p252 = pneg %p43
        %p253 = pneg %p40
        %p254 = pneg %p64
        %p255 = pneg %p61
        %p256 = pneg %p85
        %p257 = pneg %p82
        %p258 = pneg %p106
        %p259 = pneg %p103
        %p260 = pneg %p127
        %p261 = pneg %p124
        %p262 = pneg %p148
        %p263 = pneg %p145
        %p264 = pneg %p169
        %p265 = pneg %p166
        %p266 = pneg %p195
        %p267 = pneg %p192
        %s268 = sand.u32 %s182, 1
        %s269 = scalar_lea.sflag [#allocation4], %s268
        %s270 = sand.u32 %s182, 1
        %s271 = smul.addr %s270, 64
        %s272 = scalar_lea.vmem [#allocation3], %s271
        %p273 = scmp.lt.s32.totalorder %s22, 1
        %s274 = scalar_select %p273, %s22, 1
        %s275 = smul.addr %s274, 8
        %s276 = smul.addr %s275, 8
        %s277 = scalar_lea.vmem %s0, %s276
        %v278 = vld [vmem:[%s277] sm:$0xff]
        %v279 = vld [vmem:[%s277 + $0x8] sm:$0xff]
        %v280 = vld [vmem:[%s277 + $0x10] sm:$0xff]
        %v281 = vld [vmem:[%s277 + $0x18] sm:$0xff]
        %v282 = vld [vmem:[%s277 + $0x20] sm:$0xff]
        %v283 = vld [vmem:[%s277 + $0x28] sm:$0xff]
        %v284 = vld [vmem:[%s277 + $0x30] sm:$0xff]
        %v285 = vld [vmem:[%s277 + $0x38] sm:$0xff]
        %v286 = vadd.f32 %v278, %v279
        %287 = vadd.xlane.f32.xlu0 %v286
        %v288 = vpop.xlane.xlu0 %287
        %v289 = vadd.f32 %v280, %v281
        %290 = vadd.xlane.f32.xlu0 %v289
        %v291 = vpop.xlane.xlu0 %290
        %v292 = vadd.f32 %v282, %v283
        %293 = vadd.xlane.f32.xlu0 %v292
        %v294 = vpop.xlane.xlu0 %293
        %v295 = vadd.f32 %v284, %v285
        %296 = vadd.xlane.f32.xlu0 %v295
        %v297 = vpop.xlane.xlu0 %296
        %v298 = vmul.f32 %v288, 0.00390625
        %v299 = vmul.f32 %v291, 0.00390625
        %v300 = vmul.f32 %v294, 0.00390625
        %v301 = vmul.f32 %v297, 0.00390625
        %v302 = vld [vmem:[%s1] sm:$0xff]
        %v303 = vld [vmem:[%s1 + $0x8] sm:$0xff]
        %v304 = vld [vmem:[%s1 + $0x10] sm:$0xff]
        %v305 = vld [vmem:[%s1 + $0x18] sm:$0xff]
        %v306 = vmul.f32 %v302, %v298
        %v307 = vmul.f32 %v303, %v299
        %v308 = vmul.f32 %v304, %v300
        %v309 = vmul.f32 %v305, %v301
        %vm310 = vcmask 15360
        %v311 = vsel %vm310, %v306, 0.0
        %v312 = vsel %vm310, %v307, 0.0
        %v313 = vadd.f32 %v311, %v312
        %v314 = vsel %vm310, %v308, 0.0
        %v315 = vadd.f32 %v313, %v314
        %v316 = vsel %vm310, %v309, 0.0
        %v317 = vadd.f32 %v315, %v316
        %v318 = vrot.slane %v317, 4
        %v319 = vadd.f32 %v317, %v318
        %v320 = vrot.slane %v319, 2
        %v321 = vadd.f32 %v319, %v320
        %v322 = vrot.slane %v321, 1
        %v323 = vadd.f32 %v321, %v322
        %v324 = vld [vmem:[%s2] sm:$0x1]
        %v325 = vadd.f32 %v323, %v324
        %v326 = vmax.f32 %v325, 0.0
        %v327 = vld [vmem:[%s3] sm:$0xff]
        %v328 = vld [vmem:[%s3 + $0x8] sm:$0xff]
        %v329 = vld [vmem:[%s3 + $0x10] sm:$0xff]
        %v330 = vld [vmem:[%s3 + $0x18] sm:$0xff]
        %v331 = vperm.slane %v326, 0
        %v332 = vmul.f32 %v327, %v331
        %v333 = vmul.f32 %v328, %v331
        %v334 = vmul.f32 %v329, %v331
        %v335 = vmul.f32 %v330, %v331
        %v336 = vsel %vm310, %v332, 0.0
        %337 = vadd.xlane.f32.xlu0 %v336
        %v338 = vpop.xlane.xlu0 %337
        %v339 = vsel %vm310, %v333, 0.0
        %340 = vadd.xlane.f32.xlu0 %v339
        %v341 = vpop.xlane.xlu0 %340
        %v342 = vsel %vm310, %v334, 0.0
        %343 = vadd.xlane.f32.xlu0 %v342
        %v344 = vpop.xlane.xlu0 %343
        %v345 = vsel %vm310, %v335, 0.0
        %346 = vadd.xlane.f32.xlu0 %v345
        %v347 = vpop.xlane.xlu0 %346
        %v348 = vld [vmem:[%s4] sm:$0xff]
        %v349 = vld [vmem:[%s4 + $0x8] sm:$0xff]
        %v350 = vld [vmem:[%s4 + $0x10] sm:$0xff]
        %v351 = vld [vmem:[%s4 + $0x18] sm:$0xff]
        %v352 = vadd.f32 %v338, %v348
        %v353 = vadd.f32 %v341, %v349
        %v354 = vadd.f32 %v344, %v350
        %v355 = vadd.f32 %v347, %v351
        %v356 = vmul.f32 %v352, 0.5
        %v357 = vmul.f32 %v353, 0.5
        %v358 = vmul.f32 %v354, 0.5
        %v359 = vmul.f32 %v355, 0.5
        %v360 = vtanh.pop %v356
        %v361 = vtanh.pop %v357
        %v362 = vtanh.pop %v358
        %v363 = vtanh.pop %v359
        %v364 = vadd.f32 %v360, 1.0
        %v365 = vadd.f32 %v361, 1.0
        %v366 = vadd.f32 %v362, 1.0
        %v367 = vadd.f32 %v363, 1.0
        %v368 = vmul.f32 %v364, 0.5
        %v369 = vmul.f32 %v365, 0.5
        %v370 = vmul.f32 %v366, 0.5
        %v371 = vmul.f32 %v367, 0.5
        %v372 = vld [vmem:[%s5] sm:$0xff]
        %v373 = vld [vmem:[%s5 + $0x8] sm:$0xff]
        %v374 = vld [vmem:[%s5 + $0x10] sm:$0xff]
        %v375 = vld [vmem:[%s5 + $0x18] sm:$0xff]
        %377 = vset.pattern.permute.xlu0 0
        %378 = vperm.xlu0 %377, %v372
        %v379 = vpop.permute.xlu0 %378
        %382 = vset.pattern.permute.xlu0 0
        %383 = vperm.xlu0 %382, %v373
        %v384 = vpop.permute.xlu0 %383
        %387 = vset.pattern.permute.xlu0 0
        %388 = vperm.xlu0 %387, %v374
        %v389 = vpop.permute.xlu0 %388
        %392 = vset.pattern.permute.xlu0 0
        %393 = vperm.xlu0 %392, %v375
        %v394 = vpop.permute.xlu0 %393
        %v396 = vmul.f32 %v278, %v379
        %v397 = vmul.f32 %v279, %v379
        %v398 = vmul.f32 %v280, %v384
        %v399 = vmul.f32 %v281, %v384
        %v400 = vmul.f32 %v282, %v389
        %v401 = vmul.f32 %v283, %v389
        %v402 = vmul.f32 %v284, %v394
        %v403 = vmul.f32 %v285, %v394
        %v404 = vadd.f32 %v396, %v398
        %v405 = vadd.f32 %v404, %v400
        %v406 = vadd.f32 %v405, %v402
        %v407 = vrot.slane %v406, 4
        %v408 = vadd.f32 %v406, %v407
        %v409 = vrot.slane %v408, 2
        %v410 = vadd.f32 %v408, %v409
        %v411 = vrot.slane %v410, 1
        %v412 = vadd.f32 %v410, %v411
        %v413 = vadd.f32 %v397, %v399
        %v414 = vadd.f32 %v413, %v401
        %v415 = vadd.f32 %v414, %v403
        %v416 = vrot.slane %v415, 4
        %v417 = vadd.f32 %v415, %v416
        %v418 = vrot.slane %v417, 2
        %v419 = vadd.f32 %v417, %v418
        %v420 = vrot.slane %v419, 1
        %v421 = vadd.f32 %v419, %v420
        %s422 = sld [smem:[#allocation2]]
        %v423 = vstv %s422
        %v424 = vadd.f32 %v412, %v423
        %v425 = vadd.f32 %v421, %v423
        %v426 = vmul.f32 %v424, 0.5
        %v427 = vmul.f32 %v425, 0.5
        %v428 = vtanh.pop %v426
        %v429 = vtanh.pop %v427
        %v430 = vadd.f32 %v428, 1.0
        %v431 = vadd.f32 %v429, 1.0
        %v432 = vmul.f32 %v430, 0.5
        %v433 = vmul.f32 %v431, 0.5
        %435 = vset.pattern.permute.xlu0 0
        %436 = vperm.xlu0 %435, %v368
        %v437 = vpop.permute.xlu0 %436
        %440 = vset.pattern.permute.xlu0 0
        %441 = vperm.xlu0 %440, %v369
        %v442 = vpop.permute.xlu0 %441
        %445 = vset.pattern.permute.xlu0 0
        %446 = vperm.xlu0 %445, %v370
        %v447 = vpop.permute.xlu0 %446
        %450 = vset.pattern.permute.xlu0 0
        %451 = vperm.xlu0 %450, %v371
        %v452 = vpop.permute.xlu0 %451
        %v454 = vadd.f32 %v437, %v432
        %v455 = vadd.f32 %v437, %v433
        %v456 = vadd.f32 %v442, %v432
        %v457 = vadd.f32 %v442, %v433
        %v458 = vadd.f32 %v447, %v432
        %v459 = vadd.f32 %v447, %v433
        %v460 = vadd.f32 %v452, %v432
        %v461 = vadd.f32 %v452, %v433
        %v462 = vmul.f32 %v278, %v454
        %v463 = vmul.f32 %v279, %v455
        %v464 = vmul.f32 %v280, %v456
        %v465 = vmul.f32 %v281, %v457
        %v466 = vmul.f32 %v282, %v458
        %v467 = vmul.f32 %v283, %v459
        %v468 = vmul.f32 %v284, %v460
        %v469 = vmul.f32 %v285, %v461
        %470 = vst [vmem:[%s272] sm:$0xff] %v462
        %471 = vst [vmem:[%s272 + $0x8] sm:$0xff] %v463
        %472 = vst [vmem:[%s272 + $0x10] sm:$0xff] %v464
        %473 = vst [vmem:[%s272 + $0x18] sm:$0xff] %v465
        %474 = vst [vmem:[%s272 + $0x20] sm:$0xff] %v466
        %475 = vst [vmem:[%s272 + $0x28] sm:$0xff] %v467
        %476 = vst [vmem:[%s272 + $0x30] sm:$0xff] %v468
        %477 = vst [vmem:[%s272 + $0x38] sm:$0xff] %v469
        %s478 = sand.u32 %s182, 1
        %s479 = scalar_lea.sflag [#allocation4], %s478
        %s480 = sand.u32 %s182, 1
        %s481 = smul.addr %s480, 64
        %s482 = scalar_lea.vmem [#allocation3], %s481
        // Predicated region
        $region49: #{tpu_custom_call.1} parent=47 // pred_check
          %p483 = pneg %p192
        $region50: #{tpu_custom_call.1} parent=47 // pred_check_branch
          %485 = sbr.rel (%p483) target = $region52
        $region51: #{tpu_custom_call.1} parent=47 // pred_region
          %487 = vsyncadd %s479, 0
          %s488 = smul.addr %s22, 8
          %s489 = smul.addr %s488, 8
          %s490 = scalar_lea.hbm %s7, %s489
          %s491 = sshll.u32 %s482, 4
          %s492 = int_to_ptr.vmem [resolvable:$true] %s491
          %s493 = sshll.u32 %s490, 4
          %s494 = int_to_ptr.hbm [resolvable:$true] %s493
          %499 = dma.vmem_to_hbm [thread:$0]  %s492, 1024, %s494, %s479, 256, 256, 16
        $region52: #{tpu_custom_call.1} parent=47 // pred_fallthru
          _
      $region48: #{tpu_custom_call.1} parent=5 // pred_fallthru
        _
      %p500 = scmp.le.s32.totalorder 2, %s17
      // Predicated region
      $region53: #{tpu_custom_call.1} parent=5 // pred_check
        %p501 = pneg %p500
      $region54: #{tpu_custom_call.1} parent=5 // pred_check_branch
        %503 = sbr.rel (%p501) target = $region56
      $region55: #{tpu_custom_call.1} parent=5 // pred_region
        %s504 = ssub.s32 %s17, 2
        // Predicated region
        $region57: #{tpu_custom_call.1} parent=55 // pred_check
          %p505 = pneg %p198
        $region58: #{tpu_custom_call.1} parent=55 // pred_check_branch
          %507 = sbr.rel (%p505) target = $region60
        $region59: #{tpu_custom_call.1} parent=55 // pred_region
          %s508 = sand.u32 %s183, 1
          %s509 = scalar_lea.sflag [#allocation4], %s508
          %s510 = sand.u32 %s183, 1
          %s511 = smul.addr %s510, 64
          %s512 = scalar_lea.vmem [#allocation3], %s511
          %514 = dma.done %s509, 1024
        $region60: #{tpu_custom_call.1} parent=55 // pred_fallthru
          _
      $region56: #{tpu_custom_call.1} parent=5 // pred_fallthru
        _
    $region6: #{tpu_custom_call.1} parent=1 // loop_footer
      %s21 = sadd.s32 1, %s17
    $region7: #{tpu_custom_call.1} parent=1 // loop_footer_branch
      %16 = sbr.rel target = $region3
    $region8: #{tpu_custom_call.1} parent=1 // loop_exit
      _
    %515 = vsyncpa [#allocation4], 1
    %s516 = scalar_lea.sflag [#allocation4], 1
    %517 = vsyncpa %s516, 1

</llo_original>
